<compile_context>
chip_gen: v7x
topology: tpu7x:2x2x1
jax: 0.10.0
libtpu: 0.0.40
codegen_flags: <defaults>
</compile_context>

<pallas_src>
import numpy as np
import jax
import jax.numpy as jnp
from jax.experimental import pallas as pl
from jax.experimental.pallas import tpu as pltpu

_EPS = 1e-6
_RGB_W = (0.299, 0.587, 0.114)
_T1 = 0.41421356237309503   # tan(22.5 deg)
_T2 = 2.414213562373095     # tan(67.5 deg)


def _gaussian_1d(ksize: int = 5, sigma: float = 1.0) -> np.ndarray:
    x = np.arange(ksize, dtype=np.float64) - ksize // 2
    g = np.exp(-(x ** 2) / (2.0 * sigma ** 2))
    return (g / g.sum()).astype(np.float32)


_G5 = _gaussian_1d(5, 1.0)   # symmetric: taps at offsets (-2,-1,0,+1,+2)


def _shift_cols(x, d, wp):
    """y[..., c] = x[..., (c + d) % wp] via an XLU lane rotation (shift kept >= 0)."""
    return pltpu.roll(x, (-d) % wp, 1)


def _pick_tile_h(H, WP):
    """Tile height: keep ~16 live full-width f32 rows/output-row under ~16 MiB."""
    budget_rows = (16 * 1024 * 1024) // (16 * WP * 4)
    th = max(8, min(256, ((budget_rows - 8) // 8) * 8))
    th = min(th, ((H + 7) // 8) * 8)   # never bigger than (padded) image height
    return max(th, 8)


def _make_kernel(TH, WP, H, W):
    gw2 = float(_G5[0])   # |offset| == 2
    gw1 = float(_G5[1])   # |offset| == 1
    gw0 = float(_G5[2])   # center

    def kernel(a_ref, b_ref, o_ref):
        # a_ref: (TH, WP)  padded-gray rows [t*TH, t*TH+TH)    (g3 row k <-> gray row k-4)
        # b_ref: (8, WP)   padded-gray rows [t*TH+TH, t*TH+TH+8)  -- bottom halo
        # o_ref: (TH, WP)  suppressed magnitude for output rows [r0, r0+TH)
        r0 = pl.program_id(0) * TH
        # slab row i <-> gray row r0 + i - 4  (rows -2..-1 / H..H+1 are real reflect rows)
        g = jnp.concatenate([a_ref[...], b_ref[...]], axis=0)   # (TH+8, WP)
        col = jax.lax.broadcasted_iota(jnp.int32, (1, WP), 1)

        # ---- 2) separable 5-tap Gaussian blur --------------------------------
        # vertical (sublane) pass: vb[j] <-> blurred global row r0 - 2 + j
        vb = (gw2 * (g[0:TH + 4] + g[4:TH + 8])
              + gw1 * (g[1:TH + 5] + g[3:TH + 7])
              + gw0 * g[2:TH + 6])                              # (TH+4, WP)

        # horizontal (lane) pass with reflect border at cols 0 / W-1
        e1 = _shift_cols(vb, 1, WP)    # vb[c+1]
        e2 = _shift_cols(vb, 2, WP)    # vb[c+2]
        w1 = _shift_cols(vb, -1, WP)   # vb[c-1]
        w2 = _shift_cols(vb, -2, WP)   # vb[c-2]
        w2f = jnp.where(col == 0, e2, jnp.where(col == 1, vb, w2))
        w1f = jnp.where(col == 0, e1, w1)
        e1f = jnp.where(col == W - 1, w1, e1)
        e2f = jnp.where(col == W - 1, w2, jnp.where(col == W - 2, vb, e2))
        bl = gw2 * (w2f + e2f) + gw1 * (w1f + e1f) + gw0 * vb   # (TH+4, WP)

        # replicate the single out-of-image rows (-1 and H) needed by Sobel
        rows_b = jax.lax.broadcasted_iota(jnp.int32, (TH + 4, 1), 0) + (r0 - 2)
        bl_up = jnp.concatenate([bl[1:], bl[-1:]], axis=0)      # bl[j+1]
        bl_dn = jnp.concatenate([bl[:1], bl[:-1]], axis=0)      # bl[j-1]
        bl = jnp.where(rows_b == -1, bl_up, jnp.where(rows_b == H, bl_dn, bl))

        # ---- 3) Sobel (replicate border in columns) --------------------------
        ble = jnp.where(col == W - 1, bl, _shift_cols(bl, 1, WP))
        blw = jnp.where(col == 0, bl, _shift_cols(bl, -1, WP))
        d = ble - blw
        s = blw + 2.0 * bl + ble
        gx = d[0:TH + 2] + 2.0 * d[1:TH + 3] + d[2:TH + 4]      # (TH+2, WP)
        gy = s[2:TH + 4] - s[0:TH + 2]                          # (TH+2, WP)

        # ---- 4) magnitude -----------------------------------------------------
        mag = jnp.sqrt(gx * gx + gy * gy + _EPS)                # rows <-> r0-1+m

        # ---- 5) 4-axis NMS (zero border) -------------------------------------
        rows_m = jax.lax.broadcasted_iota(jnp.int32, (TH + 2, 1), 0) + (r0 - 1)
        magz = jnp.where((rows_m >= 0) & (rows_m < H), mag, 0.0)
        mze = jnp.where(col == W - 1, 0.0, _shift_cols(magz, 1, WP))   # east nbr
        mzw = jnp.where(col == 0, 0.0, _shift_cols(magz, -1, WP))      # west nbr

        n_ew = jnp.maximum(mze[1:TH + 1], mzw[1:TH + 1])        # E / W
        n_sn = jnp.maximum(magz[2:TH + 2], magz[0:TH])          # S / N
        n_senw = jnp.maximum(mze[2:TH + 2], mzw[0:TH])          # SE / NW
        n_swne = jnp.maximum(mzw[2:TH + 2], mze[0:TH])          # SW / NE

        gxc = gx[1:TH + 1]
        gyc = gy[1:TH + 1]
        axx = jnp.abs(gxc)
        ayy = jnp.abs(gyc)
        horiz = ayy <= _T1 * axx
        vert = ayy >= _T2 * axx
        diag_main = (gxc * gyc) > 0.0
        thresh = jnp.where(horiz, n_ew,
                 jnp.where(vert, n_sn,
                 jnp.where(diag_main, n_senw, n_swne)))

        # ---- 6) suppressed magnitude ------------------------------------------
        magc = mag[1:TH + 1]
        o_ref[...] = jnp.where(magc > thresh, magc, 0.0)

    return kernel


def canny_edge(img, tile_h=None):
    """img: (C, H, W) float32 with C in {1, 3}. Returns (3, H, W) float32."""
    C, H, W = img.shape
    assert C in (1, 3), "CannyEdge expects a 1- or 3-channel CHW image"
    assert H >= 3 and W >= 3, "image too small for 5x5 reflect padding"
    img = img.astype(jnp.float32)

    # Glue (cheap, per-pixel / layout only): grayscale, row reflect-pad, lane + halo
    # zero pad, and the final 3-channel broadcast.  Everything else is in the kernel.
    if C == 3:
        gray = _RGB_W[0] * img[0] + _RGB_W[1] * img[1] + _RGB_W[2] * img[2]
    else:
        gray = img[0]

    WP = max(128, ((W + 127) // 128) * 128)          # lane-dense width
    TH = _pick_tile_h(H, WP) if tile_h is None else tile_h
    assert TH % 8 == 0 and TH >= 8
    H_t = ((H + TH - 1) // TH) * TH
    nt = H_t // TH

    # 2 real reflect rows each side (blur border), then a single constant pad adds
    # 2 don't-care rows on top, (H_t - H + 2) don't-care rows at the bottom, and the
    # lane padding.  Don't-care rows never reach the output (proved by the in-kernel
    # replicate / zero-border fixes).  g3: (H_t + 8, WP), g3 row k <-> gray row k - 4.
    g1 = jnp.pad(gray, ((2, 2), (0, 0)), mode="reflect")
    g3 = jnp.pad(g1, ((2, H_t - H + 2), (0, WP - W)))

    nb8 = TH // 8
    out = pl.pallas_call(
        _make_kernel(TH, WP, H, W),
        out_shape=jax.ShapeDtypeStruct((H_t, WP), jnp.float32),
        grid=(nt,),
        in_specs=[
            # main TH rows of the slab: g3 rows [t*TH, t*TH+TH)
            pl.BlockSpec((TH, WP), lambda t: (t, 0)),
            # 8-row bottom halo: g3 rows [t*TH+TH, t*TH+TH+8)  (block units of 8 rows)
            pl.BlockSpec((8, WP), lambda t: ((t + 1) * nb8, 0)),
        ],
        out_specs=pl.BlockSpec((TH, WP), lambda t: (t, 0)),
        compiler_params=pltpu.CompilerParams(
            dimension_semantics=("parallel",),
            vmem_limit_bytes=48 * 1024 * 1024,
        ),
    )(g3, g3)

    edge = out[:H, :W]
    return jnp.broadcast_to(edge[None, :, :], (3, H, W))


# ---------------------------------------------------------------------------
# Pure-JAX reference (kornia-faithful, used only for the in-script sanity check)
# ---------------------------------------------------------------------------
def _canny_ref(img):
    C, H, W = img.shape
    if C == 3:
        gray = _RGB_W[0] * img[0] + _RGB_W[1] * img[1] + _RGB_W[2] * img[2]
    else:
        gray = img[0]
    gray = gray.astype(jnp.float32)

    gp = jnp.pad(gray, 2, mode="reflect")
    blur = jnp.zeros((H, W), jnp.float32)
    for dy in range(5):
        for dx in range(5):
            blur = blur + float(_G5[dy] * _G5[dx]) * gp[dy:dy + H, dx:dx + W]

    bp = jnp.pad(blur, 1, mode="edge")
    sx = np.array([[-1., 0., 1.], [-2., 0., 2.], [-1., 0., 1.]], np.float32)
    sy = sx.T
    gx = jnp.zeros((H, W), jnp.float32)
    gy = jnp.zeros((H, W), jnp.float32)
    for dy in range(3):
        for dx in range(3):
            gx = gx + float(sx[dy, dx]) * bp[dy:dy + H, dx:dx + W]
            gy = gy + float(sy[dy, dx]) * bp[dy:dy + H, dx:dx + W]

    mag = jnp.sqrt(gx * gx + gy * gy + _EPS)
    mp = jnp.pad(mag, 1)                      # zero border for NMS

    def nb(dy, dx):
        return mp[1 + dy:1 + dy + H, 1 + dx:1 + dx + W]

    # kornia NMS-kernel direction order: 0=E, 1=SE, 2=S, 3=SW, 4=W, 5=NW, 6=N, 7=NE
    neigh = jnp.stack([nb(0, 1), nb(1, 1), nb(1, 0), nb(1, -1),
                       nb(0, -1), nb(-1, -1), nb(-1, 0), nb(-1, 1)], 0)
    ang = jnp.degrees(jnp.arctan2(gy, gx))
    idx = jnp.round(ang / 45.0).astype(jnp.int32) % 8
    pos = jnp.take_along_axis(neigh, idx[None], 0)[0]
    neg = jnp.take_along_axis(neigh, ((idx + 4) % 8)[None], 0)[0]
    edge = jnp.where((mag > pos) & (mag > neg), mag, 0.0)
    return jnp.broadcast_to(edge[None], (3, H, W))


if __name__ == "__main__":
    key = jax.random.PRNGKey(0)
    k1, k2 = jax.random.split(key)

    # Small single-tile CHW "image" (module's expected input layout).
    img = jax.random.uniform(k1, (3, 16, 16), dtype=jnp.float32)
    edge = jax.jit(canny_edge)(img)
    jax.block_until_ready(edge)
    assert edge.shape == (3, 16, 16) and edge.dtype == jnp.float32
    assert bool(jnp.all(jnp.isfinite(edge)))
    ref = _canny_ref(img)
    match = float(jnp.mean((jnp.abs(edge - ref) <= 1e-4).astype(jnp.float32)))
    assert match >= 0.99, f"single-tile mismatch fraction too high: {1 - match}"

    # Multi-row-tile case (non-multiple H and W) exercising the two-block halo path.
    img2 = jax.random.uniform(k2, (3, 40, 20), dtype=jnp.float32)
    edge2 = jax.jit(lambda x: canny_edge(x, tile_h=16))(img2)
    jax.block_until_ready(edge2)
    assert edge2.shape == (3, 40, 20) and bool(jnp.all(jnp.isfinite(edge2)))
    ref2 = _canny_ref(img2)
    match2 = float(jnp.mean((jnp.abs(edge2 - ref2) <= 1e-4).astype(jnp.float32)))
    assert match2 >= 0.99, f"multi-tile mismatch fraction too high: {1 - match2}"

    print("KERNEL_OK")
</pallas_src>

<mosaic_0001>
module attributes {stable_mosaic.version = 11 : i64} {
  func.func @kernel(%arg0: i32, %arg1: memref<16x128xf32, #tpu.memory_space<vmem>>, %arg2: memref<8x128xf32, #tpu.memory_space<vmem>>, %arg3: memref<16x128xf32, #tpu.memory_space<vmem>>) attributes {dimension_semantics = [#tpu.dimension_semantics<parallel>], iteration_bounds = array<i64: 1>, scalar_prefetch = 0 : i64, scratch_operands = 0 : i64, tpu.core_type = #tpu.core_type<tc>, window_params = [{transform_indices = @transform_0, window_bounds = array<i64: 16, 128>}, {transform_indices = @transform_1, window_bounds = array<i64: 8, 128>}, {transform_indices = @transform_2, window_bounds = array<i64: 16, 128>}]} {
    %c16_i32 = arith.constant 16 : i32
    %0 = arith.muli %arg0, %c16_i32 : i32
    %c0 = arith.constant 0 : index
    %c0_0 = arith.constant 0 : index
    %1 = vector.load %arg1[%c0, %c0_0] : memref<16x128xf32, #tpu.memory_space<vmem>>, vector<16x128xf32>
    %c0_1 = arith.constant 0 : index
    %c0_2 = arith.constant 0 : index
    %2 = vector.load %arg2[%c0_1, %c0_2] : memref<8x128xf32, #tpu.memory_space<vmem>>, vector<8x128xf32>
    %3 = tpu.concatenate %1, %2 in 0 : vector<16x128xf32>, vector<8x128xf32> -> vector<24x128xf32>
    %4 = tpu.iota {dimensions = array<i32: 1>} : vector<1x128xi32>
    %5 = vector.extract_strided_slice %3 {offsets = [0, 0], sizes = [20, 128], strides = [1, 1]} : vector<24x128xf32> to vector<20x128xf32>
    %6 = vector.extract_strided_slice %3 {offsets = [4, 0], sizes = [20, 128], strides = [1, 1]} : vector<24x128xf32> to vector<20x128xf32>
    %7 = arith.addf %5, %6 : vector<20x128xf32>
    %cst = arith.constant 0.054488685 : f32
    %8 = vector.broadcast %cst : f32 to vector<20x128xf32>
    %9 = arith.mulf %8, %7 : vector<20x128xf32>
    %10 = vector.extract_strided_slice %3 {offsets = [1, 0], sizes = [20, 128], strides = [1, 1]} : vector<24x128xf32> to vector<20x128xf32>
    %11 = vector.extract_strided_slice %3 {offsets = [3, 0], sizes = [20, 128], strides = [1, 1]} : vector<24x128xf32> to vector<20x128xf32>
    %12 = arith.addf %10, %11 : vector<20x128xf32>
    %cst_3 = arith.constant 0.244201347 : f32
    %13 = vector.broadcast %cst_3 : f32 to vector<20x128xf32>
    %14 = arith.mulf %13, %12 : vector<20x128xf32>
    %15 = arith.addf %9, %14 : vector<20x128xf32>
    %16 = vector.extract_strided_slice %3 {offsets = [2, 0], sizes = [20, 128], strides = [1, 1]} : vector<24x128xf32> to vector<20x128xf32>
    %cst_4 = arith.constant 0.402619958 : f32
    %17 = vector.broadcast %cst_4 : f32 to vector<20x128xf32>
    %18 = arith.mulf %17, %16 : vector<20x128xf32>
    %19 = arith.addf %15, %18 : vector<20x128xf32>
    %c127_i32 = arith.constant 127 : i32
    %20 = tpu.dynamic_rotate %19 by %c127_i32 dim 1 : vector<20x128xf32>, i32 -> vector<20x128xf32>
    %c126_i32 = arith.constant 126 : i32
    %21 = tpu.dynamic_rotate %19 by %c126_i32 dim 1 : vector<20x128xf32>, i32 -> vector<20x128xf32>
    %c1_i32 = arith.constant 1 : i32
    %22 = tpu.dynamic_rotate %19 by %c1_i32 dim 1 : vector<20x128xf32>, i32 -> vector<20x128xf32>
    %c2_i32 = arith.constant 2 : i32
    %23 = tpu.dynamic_rotate %19 by %c2_i32 dim 1 : vector<20x128xf32>, i32 -> vector<20x128xf32>
    %c0_i32 = arith.constant 0 : i32
    %24 = vector.broadcast %c0_i32 : i32 to vector<1x128xi32>
    %25 = arith.cmpi eq, %4, %24 : vector<1x128xi32>
    %c1_i32_5 = arith.constant 1 : i32
    %26 = vector.broadcast %c1_i32_5 : i32 to vector<1x128xi32>
    %27 = arith.cmpi eq, %4, %26 : vector<1x128xi32>
    %28 = vector.shape_cast %27 : vector<1x128xi1> to vector<1x128xi1>
    %29 = vector.broadcast %28 : vector<1x128xi1> to vector<20x128xi1>
    %30 = arith.select %29, %19, %23 : vector<20x128xi1>, vector<20x128xf32>
    %31 = vector.shape_cast %25 : vector<1x128xi1> to vector<1x128xi1>
    %32 = vector.broadcast %31 : vector<1x128xi1> to vector<20x128xi1>
    %33 = arith.select %32, %21, %30 : vector<20x128xi1>, vector<20x128xf32>
    %c0_i32_6 = arith.constant 0 : i32
    %34 = vector.broadcast %c0_i32_6 : i32 to vector<1x128xi32>
    %35 = arith.cmpi eq, %4, %34 : vector<1x128xi32>
    %36 = vector.shape_cast %35 : vector<1x128xi1> to vector<1x128xi1>
    %37 = vector.broadcast %36 : vector<1x128xi1> to vector<20x128xi1>
    %38 = arith.select %37, %20, %22 : vector<20x128xi1>, vector<20x128xf32>
    %c15_i32 = arith.constant 15 : i32
    %39 = vector.broadcast %c15_i32 : i32 to vector<1x128xi32>
    %40 = arith.cmpi eq, %4, %39 : vector<1x128xi32>
    %41 = vector.shape_cast %40 : vector<1x128xi1> to vector<1x128xi1>
    %42 = vector.broadcast %41 : vector<1x128xi1> to vector<20x128xi1>
    %43 = arith.select %42, %22, %20 : vector<20x128xi1>, vector<20x128xf32>
    %c15_i32_7 = arith.constant 15 : i32
    %44 = vector.broadcast %c15_i32_7 : i32 to vector<1x128xi32>
    %45 = arith.cmpi eq, %4, %44 : vector<1x128xi32>
    %c14_i32 = arith.constant 14 : i32
    %46 = vector.broadcast %c14_i32 : i32 to vector<1x128xi32>
    %47 = arith.cmpi eq, %4, %46 : vector<1x128xi32>
    %48 = vector.shape_cast %47 : vector<1x128xi1> to vector<1x128xi1>
    %49 = vector.broadcast %48 : vector<1x128xi1> to vector<20x128xi1>
    %50 = arith.select %49, %19, %21 : vector<20x128xi1>, vector<20x128xf32>
    %51 = vector.shape_cast %45 : vector<1x128xi1> to vector<1x128xi1>
    %52 = vector.broadcast %51 : vector<1x128xi1> to vector<20x128xi1>
    %53 = arith.select %52, %23, %50 : vector<20x128xi1>, vector<20x128xf32>
    %54 = arith.addf %33, %53 : vector<20x128xf32>
    %cst_8 = arith.constant 0.054488685 : f32
    %55 = vector.broadcast %cst_8 : f32 to vector<20x128xf32>
    %56 = arith.mulf %55, %54 : vector<20x128xf32>
    %57 = arith.addf %38, %43 : vector<20x128xf32>
    %cst_9 = arith.constant 0.244201347 : f32
    %58 = vector.broadcast %cst_9 : f32 to vector<20x128xf32>
    %59 = arith.mulf %58, %57 : vector<20x128xf32>
    %60 = arith.addf %56, %59 : vector<20x128xf32>
    %cst_10 = arith.constant 0.402619958 : f32
    %61 = vector.broadcast %cst_10 : f32 to vector<20x128xf32>
    %62 = arith.mulf %61, %19 : vector<20x128xf32>
    %63 = arith.addf %60, %62 : vector<20x128xf32>
    %64 = tpu.iota {dimensions = array<i32: 0>} : vector<20x1xi32>
    %c2_i32_11 = arith.constant 2 : i32
    %65 = arith.subi %0, %c2_i32_11 : i32
    %66 = vector.broadcast %65 : i32 to vector<20x1xi32>
    %67 = arith.addi %64, %66 : vector<20x1xi32>
    %68 = vector.extract_strided_slice %63 {offsets = [1, 0], sizes = [19, 128], strides = [1, 1]} : vector<20x128xf32> to vector<19x128xf32>
    %69 = vector.extract_strided_slice %63 {offsets = [19, 0], sizes = [1, 128], strides = [1, 1]} : vector<20x128xf32> to vector<1x128xf32>
    %70 = tpu.concatenate %68, %69 in 0 : vector<19x128xf32>, vector<1x128xf32> -> vector<20x128xf32>
    %71 = vector.extract_strided_slice %63 {offsets = [0, 0], sizes = [1, 128], strides = [1, 1]} : vector<20x128xf32> to vector<1x128xf32>
    %72 = vector.extract_strided_slice %63 {offsets = [0, 0], sizes = [19, 128], strides = [1, 1]} : vector<20x128xf32> to vector<19x128xf32>
    %73 = tpu.concatenate %71, %72 in 0 : vector<1x128xf32>, vector<19x128xf32> -> vector<20x128xf32>
    %c-1_i32 = arith.constant -1 : i32
    %74 = vector.broadcast %c-1_i32 : i32 to vector<20x1xi32>
    %75 = arith.cmpi eq, %67, %74 : vector<20x1xi32>
    %c16_i32_12 = arith.constant 16 : i32
    %76 = vector.broadcast %c16_i32_12 : i32 to vector<20x1xi32>
    %77 = arith.cmpi eq, %67, %76 : vector<20x1xi32>
    %78 = vector.shape_cast %77 : vector<20x1xi1> to vector<20x1xi1>
    %79 = vector.broadcast %78 : vector<20x1xi1> to vector<20x128xi1>
    %80 = arith.select %79, %73, %63 : vector<20x128xi1>, vector<20x128xf32>
    %81 = vector.shape_cast %75 : vector<20x1xi1> to vector<20x1xi1>
    %82 = vector.broadcast %81 : vector<20x1xi1> to vector<20x128xi1>
    %83 = arith.select %82, %70, %80 : vector<20x128xi1>, vector<20x128xf32>
    %c15_i32_13 = arith.constant 15 : i32
    %84 = vector.broadcast %c15_i32_13 : i32 to vector<1x128xi32>
    %85 = arith.cmpi eq, %4, %84 : vector<1x128xi32>
    %c127_i32_14 = arith.constant 127 : i32
    %86 = tpu.dynamic_rotate %83 by %c127_i32_14 dim 1 : vector<20x128xf32>, i32 -> vector<20x128xf32>
    %87 = vector.shape_cast %85 : vector<1x128xi1> to vector<1x128xi1>
    %88 = vector.broadcast %87 : vector<1x128xi1> to vector<20x128xi1>
    %89 = arith.select %88, %83, %86 : vector<20x128xi1>, vector<20x128xf32>
    %c0_i32_15 = arith.constant 0 : i32
    %90 = vector.broadcast %c0_i32_15 : i32 to vector<1x128xi32>
    %91 = arith.cmpi eq, %4, %90 : vector<1x128xi32>
    %c1_i32_16 = arith.constant 1 : i32
    %92 = tpu.dynamic_rotate %83 by %c1_i32_16 dim 1 : vector<20x128xf32>, i32 -> vector<20x128xf32>
    %93 = vector.shape_cast %91 : vector<1x128xi1> to vector<1x128xi1>
    %94 = vector.broadcast %93 : vector<1x128xi1> to vector<20x128xi1>
    %95 = arith.select %94, %83, %92 : vector<20x128xi1>, vector<20x128xf32>
    %96 = arith.subf %89, %95 : vector<20x128xf32>
    %cst_17 = arith.constant 2.000000e+00 : f32
    %97 = vector.broadcast %cst_17 : f32 to vector<20x128xf32>
    %98 = arith.mulf %97, %83 : vector<20x128xf32>
    %99 = arith.addf %95, %98 : vector<20x128xf32>
    %100 = arith.addf %99, %89 : vector<20x128xf32>
    %101 = vector.extract_strided_slice %96 {offsets = [0, 0], sizes = [18, 128], strides = [1, 1]} : vector<20x128xf32> to vector<18x128xf32>
    %102 = vector.extract_strided_slice %96 {offsets = [1, 0], sizes = [18, 128], strides = [1, 1]} : vector<20x128xf32> to vector<18x128xf32>
    %cst_18 = arith.constant 2.000000e+00 : f32
    %103 = vector.broadcast %cst_18 : f32 to vector<18x128xf32>
    %104 = arith.mulf %103, %102 : vector<18x128xf32>
    %105 = arith.addf %101, %104 : vector<18x128xf32>
    %106 = vector.extract_strided_slice %96 {offsets = [2, 0], sizes = [18, 128], strides = [1, 1]} : vector<20x128xf32> to vector<18x128xf32>
    %107 = arith.addf %105, %106 : vector<18x128xf32>
    %108 = vector.extract_strided_slice %100 {offsets = [2, 0], sizes = [18, 128], strides = [1, 1]} : vector<20x128xf32> to vector<18x128xf32>
    %109 = vector.extract_strided_slice %100 {offsets = [0, 0], sizes = [18, 128], strides = [1, 1]} : vector<20x128xf32> to vector<18x128xf32>
    %110 = arith.subf %108, %109 : vector<18x128xf32>
    %111 = arith.mulf %107, %107 : vector<18x128xf32>
    %112 = arith.mulf %110, %110 : vector<18x128xf32>
    %113 = arith.addf %111, %112 : vector<18x128xf32>
    %cst_19 = arith.constant 9.99999997E-7 : f32
    %114 = vector.broadcast %cst_19 : f32 to vector<18x128xf32>
    %115 = arith.addf %113, %114 : vector<18x128xf32>
    %116 = math.sqrt %115 : vector<18x128xf32>
    %117 = tpu.iota {dimensions = array<i32: 0>} : vector<18x1xi32>
    %c1_i32_20 = arith.constant 1 : i32
    %118 = arith.subi %0, %c1_i32_20 : i32
    %119 = vector.broadcast %118 : i32 to vector<18x1xi32>
    %120 = arith.addi %117, %119 : vector<18x1xi32>
    %c0_i32_21 = arith.constant 0 : i32
    %121 = vector.broadcast %c0_i32_21 : i32 to vector<18x1xi32>
    %122 = arith.cmpi sge, %120, %121 : vector<18x1xi32>
    %c16_i32_22 = arith.constant 16 : i32
    %123 = vector.broadcast %c16_i32_22 : i32 to vector<18x1xi32>
    %124 = arith.cmpi slt, %120, %123 : vector<18x1xi32>
    %125 = arith.andi %122, %124 : vector<18x1xi1>
    %cst_23 = arith.constant 0.000000e+00 : f32
    %126 = vector.shape_cast %125 : vector<18x1xi1> to vector<18x1xi1>
    %127 = vector.broadcast %126 : vector<18x1xi1> to vector<18x128xi1>
    %128 = vector.broadcast %cst_23 : f32 to vector<18x128xf32>
    %129 = arith.select %127, %116, %128 : vector<18x128xi1>, vector<18x128xf32>
    %c15_i32_24 = arith.constant 15 : i32
    %130 = vector.broadcast %c15_i32_24 : i32 to vector<1x128xi32>
    %131 = arith.cmpi eq, %4, %130 : vector<1x128xi32>
    %c127_i32_25 = arith.constant 127 : i32
    %132 = tpu.dynamic_rotate %129 by %c127_i32_25 dim 1 : vector<18x128xf32>, i32 -> vector<18x128xf32>
    %cst_26 = arith.constant 0.000000e+00 : f32
    %133 = vector.shape_cast %131 : vector<1x128xi1> to vector<1x128xi1>
    %134 = vector.broadcast %133 : vector<1x128xi1> to vector<18x128xi1>
    %135 = vector.broadcast %cst_26 : f32 to vector<18x128xf32>
    %136 = arith.select %134, %135, %132 : vector<18x128xi1>, vector<18x128xf32>
    %c0_i32_27 = arith.constant 0 : i32
    %137 = vector.broadcast %c0_i32_27 : i32 to vector<1x128xi32>
    %138 = arith.cmpi eq, %4, %137 : vector<1x128xi32>
    %c1_i32_28 = arith.constant 1 : i32
    %139 = tpu.dynamic_rotate %129 by %c1_i32_28 dim 1 : vector<18x128xf32>, i32 -> vector<18x128xf32>
    %cst_29 = arith.constant 0.000000e+00 : f32
    %140 = vector.shape_cast %138 : vector<1x128xi1> to vector<1x128xi1>
    %141 = vector.broadcast %140 : vector<1x128xi1> to vector<18x128xi1>
    %142 = vector.broadcast %cst_29 : f32 to vector<18x128xf32>
    %143 = arith.select %141, %142, %139 : vector<18x128xi1>, vector<18x128xf32>
    %144 = vector.extract_strided_slice %136 {offsets = [1, 0], sizes = [16, 128], strides = [1, 1]} : vector<18x128xf32> to vector<16x128xf32>
    %145 = vector.extract_strided_slice %143 {offsets = [1, 0], sizes = [16, 128], strides = [1, 1]} : vector<18x128xf32> to vector<16x128xf32>
    %146 = arith.maximumf %144, %145 : vector<16x128xf32>
    %147 = vector.extract_strided_slice %129 {offsets = [2, 0], sizes = [16, 128], strides = [1, 1]} : vector<18x128xf32> to vector<16x128xf32>
    %148 = vector.extract_strided_slice %129 {offsets = [0, 0], sizes = [16, 128], strides = [1, 1]} : vector<18x128xf32> to vector<16x128xf32>
    %149 = arith.maximumf %147, %148 : vector<16x128xf32>
    %150 = vector.extract_strided_slice %136 {offsets = [2, 0], sizes = [16, 128], strides = [1, 1]} : vector<18x128xf32> to vector<16x128xf32>
    %151 = vector.extract_strided_slice %143 {offsets = [0, 0], sizes = [16, 128], strides = [1, 1]} : vector<18x128xf32> to vector<16x128xf32>
    %152 = arith.maximumf %150, %151 : vector<16x128xf32>
    %153 = vector.extract_strided_slice %143 {offsets = [2, 0], sizes = [16, 128], strides = [1, 1]} : vector<18x128xf32> to vector<16x128xf32>
    %154 = vector.extract_strided_slice %136 {offsets = [0, 0], sizes = [16, 128], strides = [1, 1]} : vector<18x128xf32> to vector<16x128xf32>
    %155 = arith.maximumf %153, %154 : vector<16x128xf32>
    %156 = vector.extract_strided_slice %107 {offsets = [1, 0], sizes = [16, 128], strides = [1, 1]} : vector<18x128xf32> to vector<16x128xf32>
    %157 = vector.extract_strided_slice %110 {offsets = [1, 0], sizes = [16, 128], strides = [1, 1]} : vector<18x128xf32> to vector<16x128xf32>
    %158 = math.absf %156 : vector<16x128xf32>
    %159 = math.absf %157 : vector<16x128xf32>
    %cst_30 = arith.constant 0.414213568 : f32
    %160 = vector.broadcast %cst_30 : f32 to vector<16x128xf32>
    %161 = arith.mulf %160, %158 : vector<16x128xf32>
    %162 = arith.cmpf ole, %159, %161 : vector<16x128xf32>
    %cst_31 = arith.constant 2.41421366 : f32
    %163 = vector.broadcast %cst_31 : f32 to vector<16x128xf32>
    %164 = arith.mulf %163, %158 : vector<16x128xf32>
    %165 = arith.cmpf oge, %159, %164 : vector<16x128xf32>
    %166 = arith.mulf %156, %157 : vector<16x128xf32>
    %cst_32 = arith.constant 0.000000e+00 : f32
    %167 = vector.broadcast %cst_32 : f32 to vector<16x128xf32>
    %168 = arith.cmpf ogt, %166, %167 : vector<16x128xf32>
    %169 = arith.select %168, %152, %155 : vector<16x128xi1>, vector<16x128xf32>
    %170 = arith.select %165, %149, %169 : vector<16x128xi1>, vector<16x128xf32>
    %171 = arith.select %162, %146, %170 : vector<16x128xi1>, vector<16x128xf32>
    %172 = vector.extract_strided_slice %116 {offsets = [1, 0], sizes = [16, 128], strides = [1, 1]} : vector<18x128xf32> to vector<16x128xf32>
    %173 = arith.cmpf ogt, %172, %171 : vector<16x128xf32>
    %cst_33 = arith.constant 0.000000e+00 : f32
    %174 = vector.broadcast %cst_33 : f32 to vector<16x128xf32>
    %175 = arith.select %173, %172, %174 : vector<16x128xi1>, vector<16x128xf32>
    %c0_34 = arith.constant 0 : index
    %c0_35 = arith.constant 0 : index
    %176 = vector.load %arg3[%c0_34, %c0_35] : memref<16x128xf32, #tpu.memory_space<vmem>>, vector<16x128xf32>
    tpu.vector_store %arg3[%c0_34, %c0_35], %175 {strides = array<i32>} : memref<16x128xf32, #tpu.memory_space<vmem>>, vector<16x128xf32>,
    return
  }
  func.func @transform_0(%arg0: i32) -> (i32, i32) {
    %c0_i32 = arith.constant 0 : i32
    %c0_i32_0 = arith.constant 0 : i32
    return %arg0, %c0_i32 : i32, i32
  }
  func.func @transform_1(%arg0: i32) -> (i32, i32) {
    %c1_i32 = arith.constant 1 : i32
    %0 = arith.addi %arg0, %c1_i32 : i32
    %c2_i32 = arith.constant 2 : i32
    %1 = arith.muli %0, %c2_i32 : i32
    %c0_i32 = arith.constant 0 : i32
    %c0_i32_0 = arith.constant 0 : i32
    return %1, %c0_i32 : i32, i32
  }
  func.func @transform_2(%arg0: i32) -> (i32, i32) {
    %c0_i32 = arith.constant 0 : i32
    %c0_i32_0 = arith.constant 0 : i32
    return %arg0, %c0_i32 : i32, i32
  }
}

</mosaic_0001>

<llo_original>
// kernel: canny_edge.1
$region0: #{canny_edge.1}
  #allocation0 [shape = 'u32[]', space=smem, size = 0x4, offset = 0x4, fixed_abs, tag = 'smem constant byte address 0x4 - core index']
  #allocation1 [shape = 'u32[144,128]{1,0:T(1,128)}', space=vmem, size = 0x12000, scoped, tag = 'internal scratch']
  %s0 = inlined_call_operand.vmem [shape: f32[24,128], index: 0, kind: input, shape index: {}, may-alias: {0,1}]
  %s1 = inlined_call_operand.vmem [shape: f32[24,128], index: 1, kind: input, shape index: {}, may-alias: {0,1}]
  %s2 = inlined_call_operand.vmem [shape: f32[16,128], index: 2, kind: output, shape index: {}]
  %s3 = sld [smem:[#allocation0]]
  $region18: #{canny_edge.1} parent=0
    _
  %s5 = ssub.s32 1, %s3
  %s6 = scalar_select 0, %s5, %s3
  // Predicated region
  $region2: #{canny_edge.1} parent=0 // pred_check
    _
  $region3: #{canny_edge.1} parent=0 // pred_check_branch
    %8 = sbr.rel (0) target = $region5
  $region4: #{canny_edge.1} parent=0 // pred_region
    _
  $region5: #{canny_edge.1} parent=0 // pred_fallthru
    _
  // Predicated region
  $region6: #{canny_edge.1} parent=0 // pred_check
    _
  $region7: #{canny_edge.1} parent=0 // pred_check_branch
    %10 = sbr.rel (0) target = $region9
  $region8: #{canny_edge.1} parent=0 // pred_region
    %s11 = sadd.s32 0, 1
    %s12 = smul.u32 %s11, 2
    %p13 = scmp.lt.s32.totalorder %s12, 2
    %s14 = scalar_select %p13, %s12, 2
    %s15 = smul.addr %s14, 8
    %s16 = scalar_lea.vmem %s1, %s15
    %s17 = sadd.s32 0, 1
    %s18 = smul.u32 %s17, 2
  $region9: #{canny_edge.1} parent=0 // pred_fallthru
    _
  %s19 = sadd.s32 0, 1
  %s20 = smul.u32 %s19, 2
  %p21 = scmp.lt.s32.totalorder %s20, 2
  %s22 = scalar_select %p21, %s20, 2
  %s23 = smul.addr %s22, 8
  %s24 = scalar_lea.vmem %s1, %s23
  %s25 = sadd.s32 0, 1
  %s26 = smul.u32 %s25, 2
  %p27 = scmp.lt.s32.totalorder %s26, 2
  %s28 = scalar_select %p27, %s26, 2
  %s29 = smul.addr %s28, 8
  %s30 = scalar_lea.vmem %s1, %s29
  %s31 = sadd.s32 0, 1
  %s32 = smul.u32 %s31, 2
  %s33 = smul.u32 0, 16
  %v34 = vld [vmem:[%s0] sm:$0xff]
  %v35 = vld [vmem:[%s0 + $0x8] sm:$0xff]
  %v36 = vld [vmem:[%s30] sm:$0xff]
  %v37 = vlaneseq
  %v38 = vand.u32 %v37, 127
  %vm42 = vcmask 1043456
  %v43 = vrot.slane %v34, 4
  %v44 = vrot.slane %v35, 4
  %v45 = vsel %vm42, %v43, %v44
  %v46 = vrot.slane %v36, 4
  %v47 = vsel %vm42, %v44, %v46
  %v51 = vadd.f32 %v34, %v45
  %v52 = vadd.f32 %v35, %v47
  %v53 = vadd.f32 %v36, %v46
  %v54 = vmul.f32 %v51, 0.054488685
  %v55 = vmul.f32 %v52, 0.054488685
  %v56 = vmul.f32 %v53, 0.054488685
  %vm57 = vcmask 1045504
  %v58 = vrot.slane %v34, 2
  %v59 = vrot.slane %v35, 2
  %v60 = vsel %vm57, %v58, %v59
  %v61 = vrot.slane %v36, 2
  %v62 = vsel %vm57, %v59, %v61
  %v66 = vadd.f32 %v34, %v60
  %v67 = vadd.f32 %v35, %v62
  %v68 = vadd.f32 %v36, %v61
  %v69 = vmul.f32 %v66, 0.24420135
  %v70 = vmul.f32 %v67, 0.24420135
  %v71 = vmul.f32 %v68, 0.24420135
  %vm75 = vcmask 1046528
  %v76 = vrot.slane %v69, 1
  %v77 = vrot.slane %v70, 1
  %v78 = vsel %vm75, %v76, %v77
  %v79 = vrot.slane %v71, 1
  %v80 = vsel %vm75, %v77, %v79
  %v84 = vadd.f32 %v54, %v78
  %v85 = vadd.f32 %v55, %v80
  %v86 = vadd.f32 %v56, %v79
  %v87 = vmul.f32 %v34, 0.40261996
  %v88 = vmul.f32 %v35, 0.40261996
  %v89 = vmul.f32 %v36, 0.40261996
  %v93 = vrot.slane %v87, 2
  %v94 = vrot.slane %v88, 2
  %v95 = vsel %vm57, %v93, %v94
  %v96 = vrot.slane %v89, 2
  %v97 = vsel %vm57, %v94, %v96
  %v101 = vadd.f32 %v84, %v95
  %v102 = vadd.f32 %v85, %v97
  %v103 = vadd.f32 %v86, %v96
  %104 = vrot.lane.b32.xlu0 %v101, 127
  %v105 = vpop.permute.xlu0 %104
  %106 = vrot.lane.b32.xlu0 %v102, 127
  %v107 = vpop.permute.xlu0 %106
  %108 = vrot.lane.b32.xlu0 %v103, 127
  %v109 = vpop.permute.xlu0 %108
  %110 = vrot.lane.b32.xlu0 %v101, 126
  %v111 = vpop.permute.xlu0 %110
  %112 = vrot.lane.b32.xlu0 %v102, 126
  %v113 = vpop.permute.xlu0 %112
  %114 = vrot.lane.b32.xlu0 %v103, 126
  %v115 = vpop.permute.xlu0 %114
  %116 = vrot.lane.b32.xlu0 %v101, 1
  %v117 = vpop.permute.xlu0 %116
  %118 = vrot.lane.b32.xlu0 %v102, 1
  %v119 = vpop.permute.xlu0 %118
  %120 = vrot.lane.b32.xlu0 %v103, 1
  %v121 = vpop.permute.xlu0 %120
  %122 = vrot.lane.b32.xlu0 %v101, 2
  %v123 = vpop.permute.xlu0 %122
  %124 = vrot.lane.b32.xlu0 %v102, 2
  %v125 = vpop.permute.xlu0 %124
  %126 = vrot.lane.b32.xlu0 %v103, 2
  %v127 = vpop.permute.xlu0 %126
  %vm128 = vcmp.eq.s32.totalorder %v38, 0
  %vm129 = vcmp.eq.s32.totalorder %v38, 1
  %v130 = vsel %vm129, 1, 0
  %vm131 = vcmp.eq.s32.totalorder %v130, 1
  %v132 = vsel %vm131, %v101, %v123
  %v133 = vsel %vm131, %v102, %v125
  %v134 = vsel %vm131, %v103, %v127
  %v135 = vsel %vm128, 1, 0
  %vm136 = vcmp.eq.s32.totalorder %v135, 1
  %v137 = vsel %vm136, %v111, %v132
  %v138 = vsel %vm136, %v113, %v133
  %v139 = vsel %vm136, %v115, %v134
  %v140 = vsel %vm136, %v105, %v117
  %v141 = vsel %vm136, %v107, %v119
  %v142 = vsel %vm136, %v109, %v121
  %vm143 = vcmp.eq.s32.totalorder %v38, 15
  %v144 = vsel %vm143, 1, 0
  %vm145 = vcmp.eq.s32.totalorder %v144, 1
  %v146 = vsel %vm145, %v117, %v105
  %v147 = vsel %vm145, %v119, %v107
  %v148 = vsel %vm145, %v121, %v109
  %vm149 = vcmp.eq.s32.totalorder %v38, 14
  %v150 = vsel %vm149, 1, 0
  %vm151 = vcmp.eq.s32.totalorder %v150, 1
  %v152 = vsel %vm151, %v101, %v111
  %v153 = vsel %vm151, %v102, %v113
  %v154 = vsel %vm151, %v103, %v115
  %v155 = vsel %vm145, %v123, %v152
  %v156 = vsel %vm145, %v125, %v153
  %v157 = vsel %vm145, %v127, %v154
  %v158 = vadd.f32 %v137, %v155
  %v159 = vadd.f32 %v138, %v156
  %v160 = vadd.f32 %v139, %v157
  %v161 = vmul.f32 %v158, 0.054488685
  %v162 = vmul.f32 %v159, 0.054488685
  %v163 = vmul.f32 %v160, 0.054488685
  %v164 = vadd.f32 %v140, %v146
  %v165 = vadd.f32 %v141, %v147
  %v166 = vadd.f32 %v142, %v148
  %v167 = vmul.f32 %v164, 0.24420135
  %v168 = vmul.f32 %v165, 0.24420135
  %v169 = vmul.f32 %v166, 0.24420135
  %v170 = vadd.f32 %v161, %v167
  %v171 = vadd.f32 %v162, %v168
  %v172 = vadd.f32 %v163, %v169
  %v173 = vmul.f32 %v101, 0.40261996
  %v174 = vmul.f32 %v102, 0.40261996
  %v175 = vmul.f32 %v103, 0.40261996
  %v176 = vadd.f32 %v170, %v173
  %v177 = vadd.f32 %v171, %v174
  %v178 = vadd.f32 %v172, %v175
  %v179 = vlaneseq
  %v180 = vshrl.u32 %v179, 7
  %v181 = vadd.s32 %v180, 8
  %v182 = vadd.s32 %v180, 16
  %s183 = ssub.s32 %s33, 2
  %v184 = vstv %s183
  %v185 = vadd.s32 %v180, %v184
  %v186 = vadd.s32 %v181, %v184
  %v187 = vadd.s32 %v182, %v184
  %v191 = vrot.slane %v176, 1
  %v192 = vrot.slane %v177, 1
  %v193 = vsel %vm75, %v191, %v192
  %v194 = vrot.slane %v178, 1
  %v195 = vsel %vm75, %v192, %v194
  %vm199 = vcmask 1042432
  %v200 = vsel %vm199, %v194, %v178
  %vm201 = vcmask 1040384
  %v202 = vrot.slane %v176, 7
  %v203 = vrot.slane %v177, 7
  %v204 = vsel %vm201, %v202, %v203
  %v205 = vrot.slane %v178, 7
  %v206 = vsel %vm201, %v203, %v205
  %v210 = vsel %vm201, %v176, %v202
  %vm211 = vcmp.eq.s32.totalorder %v185, 4294967295
  %vm212 = vcmp.eq.s32.totalorder %v186, 4294967295
  %vm213 = vcmp.eq.s32.totalorder %v187, 4294967295
  %vm214 = vcmp.eq.s32.totalorder %v185, 16
  %vm215 = vcmp.eq.s32.totalorder %v186, 16
  %vm216 = vcmp.eq.s32.totalorder %v187, 16
  %v217 = vsel %vm214, 1, 0
  %v218 = vsel %vm215, 1, 0
  %v219 = vsel %vm216, 1, 0
  %vm220 = vcmp.eq.s32.totalorder %v217, 1
  %vm221 = vcmp.eq.s32.totalorder %v218, 1
  %vm222 = vcmp.eq.s32.totalorder %v219, 1
  %v223 = vsel %vm220, %v210, %v176
  %v224 = vsel %vm221, %v204, %v177
  %v225 = vsel %vm222, %v206, %v178
  %v226 = vsel %vm211, 1, 0
  %v227 = vsel %vm212, 1, 0
  %v228 = vsel %vm213, 1, 0
  %vm229 = vcmp.eq.s32.totalorder %v226, 1
  %vm230 = vcmp.eq.s32.totalorder %v227, 1
  %vm231 = vcmp.eq.s32.totalorder %v228, 1
  %v232 = vsel %vm229, %v193, %v223
  %v233 = vsel %vm230, %v195, %v224
  %v234 = vsel %vm231, %v200, %v225
  %235 = vrot.lane.b32.xlu0 %v232, 127
  %v236 = vpop.permute.xlu0 %235
  %237 = vrot.lane.b32.xlu0 %v233, 127
  %v238 = vpop.permute.xlu0 %237
  %239 = vrot.lane.b32.xlu0 %v234, 127
  %v240 = vpop.permute.xlu0 %239
  %v241 = vsel %vm145, %v232, %v236
  %v242 = vsel %vm145, %v233, %v238
  %v243 = vsel %vm145, %v234, %v240
  %244 = vrot.lane.b32.xlu0 %v232, 1
  %v245 = vpop.permute.xlu0 %244
  %246 = vrot.lane.b32.xlu0 %v233, 1
  %v247 = vpop.permute.xlu0 %246
  %248 = vrot.lane.b32.xlu0 %v234, 1
  %v249 = vpop.permute.xlu0 %248
  %v250 = vsel %vm136, %v232, %v245
  %v251 = vsel %vm136, %v233, %v247
  %v252 = vsel %vm136, %v234, %v249
  %v253 = vsub.f32 %v241, %v250
  %v254 = vsub.f32 %v242, %v251
  %v255 = vsub.f32 %v243, %v252
  %v256 = vmul.f32 %v232, 2.0
  %v257 = vmul.f32 %v233, 2.0
  %v258 = vmul.f32 %v234, 2.0
  %v259 = vadd.f32 %v250, %v256
  %v260 = vadd.f32 %v251, %v257
  %v261 = vadd.f32 %v252, %v258
  %v262 = vadd.f32 %v259, %v241
  %v263 = vadd.f32 %v260, %v242
  %v264 = vadd.f32 %v261, %v243
  %v265 = vmul.f32 %v253, 2.0
  %v266 = vmul.f32 %v254, 2.0
  %v267 = vmul.f32 %v255, 2.0
  %v271 = vrot.slane %v265, 1
  %v272 = vrot.slane %v266, 1
  %v273 = vsel %vm75, %v271, %v272
  %v274 = vrot.slane %v267, 1
  %v275 = vsel %vm75, %v272, %v274
  %v279 = vadd.f32 %v253, %v273
  %v280 = vadd.f32 %v254, %v275
  %v281 = vadd.f32 %v255, %v274
  %v285 = vrot.slane %v253, 2
  %v286 = vrot.slane %v254, 2
  %v287 = vsel %vm57, %v285, %v286
  %v288 = vrot.slane %v255, 2
  %v289 = vsel %vm57, %v286, %v288
  %v293 = vadd.f32 %v279, %v287
  %v294 = vadd.f32 %v280, %v289
  %v295 = vadd.f32 %v281, %v288
  %vm299 = vcmask 1041408
  %v300 = vrot.slane %v262, 6
  %v301 = vrot.slane %v263, 6
  %v302 = vsel %vm299, %v300, %v301
  %v303 = vrot.slane %v264, 6
  %v304 = vsel %vm299, %v301, %v303
  %v308 = vsub.f32 %v262, %v300
  %v309 = vsub.f32 %v263, %v302
  %v310 = vsub.f32 %v264, %v304
  %v311 = vmul.f32 %v293, %v293
  %v312 = vmul.f32 %v294, %v294
  %v313 = vmul.f32 %v295, %v295
  %v314 = vmul.f32 %v308, %v308
  %v315 = vmul.f32 %v309, %v309
  %v316 = vmul.f32 %v310, %v310
  %v320 = vrot.slane %v314, 2
  %v321 = vrot.slane %v315, 2
  %v322 = vsel %vm57, %v320, %v321
  %v323 = vrot.slane %v316, 2
  %v324 = vsel %vm57, %v321, %v323
  %v328 = vadd.f32 %v311, %v322
  %v329 = vadd.f32 %v312, %v324
  %v330 = vadd.f32 %v313, %v323
  %v331 = vadd.f32 %v328, 1e-06
  %v332 = vadd.f32 %v329, 1e-06
  %v333 = vadd.f32 %v330, 1e-06
  %v334 = vrsqrt.pop %v331
  %v335 = vmul.f32 %v331, %v334
  %vm336 = vcmp.eq.f32.partialorder %v331, inf
  %v337 = vsel %vm336, %v331, %v335
  %vm338 = vcmp.eq.f32.partialorder %v331, 0.0
  %v339 = vand.u32 %v331, 2147483648
  %v340 = vsel %vm338, %v339, %v337
  %v341 = vrsqrt.pop %v332
  %v342 = vmul.f32 %v332, %v341
  %vm343 = vcmp.eq.f32.partialorder %v332, inf
  %v344 = vsel %vm343, %v332, %v342
  %vm345 = vcmp.eq.f32.partialorder %v332, 0.0
  %v346 = vand.u32 %v332, 2147483648
  %v347 = vsel %vm345, %v346, %v344
  %v348 = vrsqrt.pop %v333
  %v349 = vmul.f32 %v333, %v348
  %vm350 = vcmp.eq.f32.partialorder %v333, inf
  %v351 = vsel %vm350, %v333, %v349
  %vm352 = vcmp.eq.f32.partialorder %v333, 0.0
  %v353 = vand.u32 %v333, 2147483648
  %v354 = vsel %vm352, %v353, %v351
  %s355 = ssub.s32 %s33, 1
  %v356 = vstv %s355
  %v357 = vadd.s32 %v180, %v356
  %v358 = vadd.s32 %v181, %v356
  %v359 = vadd.s32 %v182, %v356
  %vm360 = vcmp.ge.s32.totalorder %v357, 0
  %vm361 = vcmp.ge.s32.totalorder %v358, 0
  %vm362 = vcmp.ge.s32.totalorder %v359, 0
  %vm363 = vcmp.lt.s32.totalorder %v357, 16
  %vm364 = vcmp.lt.s32.totalorder %v358, 16
  %vm365 = vcmp.lt.s32.totalorder %v359, 16
  %vm366 = vmand %vm360, %vm363
  %vm367 = vmand %vm361, %vm364
  %vm368 = vmand %vm362, %vm365
  %v369 = vsel %vm366, 1, 0
  %v370 = vsel %vm367, 1, 0
  %v371 = vsel %vm368, 1, 0
  %vm372 = vcmp.eq.s32.totalorder %v369, 1
  %vm373 = vcmp.eq.s32.totalorder %v370, 1
  %vm374 = vcmp.eq.s32.totalorder %v371, 1
  %v375 = vsel %vm372, %v340, 0.0
  %v376 = vsel %vm373, %v347, 0.0
  %v377 = vsel %vm374, %v354, 0.0
  %378 = vrot.lane.b32.xlu0 %v375, 127
  %v379 = vpop.permute.xlu0 %378
  %380 = vrot.lane.b32.xlu0 %v376, 127
  %v381 = vpop.permute.xlu0 %380
  %382 = vrot.lane.b32.xlu0 %v377, 127
  %v383 = vpop.permute.xlu0 %382
  %v384 = vsel %vm145, 0.0, %v379
  %v385 = vsel %vm145, 0.0, %v381
  %v386 = vsel %vm145, 0.0, %v383
  %387 = vrot.lane.b32.xlu0 %v375, 1
  %v388 = vpop.permute.xlu0 %387
  %389 = vrot.lane.b32.xlu0 %v376, 1
  %v390 = vpop.permute.xlu0 %389
  %391 = vrot.lane.b32.xlu0 %v377, 1
  %v392 = vpop.permute.xlu0 %391
  %v393 = vsel %vm136, 0.0, %v388
  %v394 = vsel %vm136, 0.0, %v390
  %v395 = vsel %vm136, 0.0, %v392
  %v396 = vmax.f32 %v384, %v393
  %v397 = vmax.f32 %v385, %v394
  %v398 = vmax.f32 %v386, %v395
  %v401 = vrot.slane %v375, 6
  %v402 = vrot.slane %v376, 6
  %v403 = vsel %vm299, %v401, %v402
  %v407 = vmax.f32 %v375, %v401
  %v408 = vmax.f32 %v376, %v403
  %v409 = vmax.f32 %v377, %v402
  %v412 = vrot.slane %v393, 6
  %v413 = vrot.slane %v394, 6
  %v414 = vsel %vm299, %v412, %v413
  %v418 = vmax.f32 %v384, %v412
  %v419 = vmax.f32 %v385, %v414
  %v420 = vmax.f32 %v386, %v413
  %v423 = vrot.slane %v384, 6
  %v424 = vrot.slane %v385, 6
  %v425 = vsel %vm299, %v423, %v424
  %v429 = vmax.f32 %v393, %v423
  %v430 = vmax.f32 %v394, %v425
  %v431 = vmax.f32 %v395, %v424
  %v432 = vand.u32 2147483647, %v293
  %v433 = vand.u32 2147483647, %v294
  %v434 = vand.u32 2147483647, %v295
  %v435 = vand.u32 2147483647, %v308
  %v436 = vand.u32 2147483647, %v309
  %v437 = vand.u32 2147483647, %v310
  %v438 = vmul.f32 %v432, 0.41421357
  %v439 = vmul.f32 %v433, 0.41421357
  %v440 = vmul.f32 %v434, 0.41421357
  %v444 = vrot.slane %v438, 6
  %v445 = vrot.slane %v439, 6
  %v446 = vsel %vm299, %v444, %v445
  %v447 = vrot.slane %v440, 6
  %v448 = vsel %vm299, %v445, %v447
  %vm452 = vcmp.le.f32.partialorder %v435, %v444
  %vm453 = vcmp.le.f32.partialorder %v436, %v446
  %vm454 = vcmp.le.f32.partialorder %v437, %v448
  %v455 = vmul.f32 %v432, 2.4142137
  %v456 = vmul.f32 %v433, 2.4142137
  %v457 = vmul.f32 %v434, 2.4142137
  %v461 = vrot.slane %v455, 6
  %v462 = vrot.slane %v456, 6
  %v463 = vsel %vm299, %v461, %v462
  %v464 = vrot.slane %v457, 6
  %v465 = vsel %vm299, %v462, %v464
  %vm469 = vcmp.ge.f32.partialorder %v435, %v461
  %vm470 = vcmp.ge.f32.partialorder %v436, %v463
  %vm471 = vcmp.ge.f32.partialorder %v437, %v465
  %v475 = vrot.slane %v308, 2
  %v476 = vrot.slane %v309, 2
  %v477 = vsel %vm57, %v475, %v476
  %v478 = vrot.slane %v310, 2
  %v479 = vsel %vm57, %v476, %v478
  %v483 = vmul.f32 %v293, %v477
  %v484 = vmul.f32 %v294, %v479
  %v485 = vmul.f32 %v295, %v478
  %vm486 = vcmp.gt.f32.partialorder %v483, 0.0
  %vm487 = vcmp.gt.f32.partialorder %v484, 0.0
  %vm488 = vcmp.gt.f32.partialorder %v485, 0.0
  %v492 = vrot.slane %v418, 1
  %v493 = vrot.slane %v419, 1
  %v494 = vsel %vm75, %v492, %v493
  %v495 = vrot.slane %v420, 1
  %v496 = vsel %vm75, %v493, %v495
  %v503 = vrot.slane %v429, 1
  %v504 = vrot.slane %v430, 1
  %v505 = vsel %vm75, %v503, %v504
  %v506 = vrot.slane %v431, 1
  %v507 = vsel %vm75, %v504, %v506
  %v511 = vsel %vm486, %v494, %v505
  %v512 = vsel %vm487, %v496, %v507
  %v513 = vsel %vm488, %v495, %v506
  %v517 = vrot.slane %v407, 7
  %v518 = vrot.slane %v408, 7
  %v519 = vsel %vm201, %v517, %v518
  %v520 = vrot.slane %v409, 7
  %v521 = vsel %vm201, %v518, %v520
  %v528 = vrot.slane %v511, 6
  %v529 = vrot.slane %v512, 6
  %v530 = vsel %vm299, %v528, %v529
  %v531 = vrot.slane %v513, 6
  %v532 = vsel %vm299, %v529, %v531
  %v536 = vsel %vm469, %v517, %v528
  %v537 = vsel %vm470, %v519, %v530
  %v538 = vsel %vm471, %v521, %v532
  %v542 = vrot.slane %v396, 6
  %v543 = vrot.slane %v397, 6
  %v544 = vsel %vm299, %v542, %v543
  %v545 = vrot.slane %v398, 6
  %v546 = vsel %vm299, %v543, %v545
  %v550 = vsel %vm452, %v542, %v536
  %v551 = vsel %vm453, %v544, %v537
  %v552 = vsel %vm454, %v546, %v538
  %v556 = vrot.slane %v550, 2
  %v557 = vrot.slane %v551, 2
  %v558 = vsel %vm57, %v556, %v557
  %v559 = vrot.slane %v552, 2
  %v560 = vsel %vm57, %v557, %v559
  %vm564 = vcmp.gt.f32.partialorder %v340, %v558
  %vm565 = vcmp.gt.f32.partialorder %v347, %v560
  %vm566 = vcmp.gt.f32.partialorder %v354, %v559
  %v567 = vsel %vm564, %v340, 0.0
  %v568 = vsel %vm565, %v347, 0.0
  %v569 = vsel %vm566, %v354, 0.0
  %570 = vst [vmem:[%s2 - $0x1] sm:$0xfe] %v567
  %571 = vst [vmem:[%s2 + $0x7] sm:$0xff] %v568
  %572 = vst [vmem:[%s2 + $0xf] sm:$0x1] %v569
  // Predicated region
  $region10: #{canny_edge.1} parent=0 // pred_check
    _
  $region11: #{canny_edge.1} parent=0 // pred_check_branch
    %574 = sbr.rel (0) target = $region13
  $region12: #{canny_edge.1} parent=0 // pred_region
    _
  $region13: #{canny_edge.1} parent=0 // pred_fallthru
    _
  // Predicated region
  $region14: #{canny_edge.1} parent=0 // pred_check
    _
  $region15: #{canny_edge.1} parent=0 // pred_check_branch
    %576 = sbr.rel (0) target = $region17
  $region16: #{canny_edge.1} parent=0 // pred_region
    _
  $region17: #{canny_edge.1} parent=0 // pred_fallthru
    _

</llo_original>
